<compile_context>
chip_gen: v5e
topology: v5e:2x2
jax: 0.10.0
libtpu: 0.0.40
codegen_flags: <defaults>
</compile_context>

<pallas_src>
import jax
import jax.numpy as jnp
from jax.experimental import pallas as pl
from jax.experimental.pallas import tpu as pltpu


# ----------------------------- model hyper-params -----------------------------
INPUT_SIZE = 16     # features per sample after flatten
L1 = 512
L2 = 128
L3 = 64
OUT_LANES = 128     # lane-dense padded width of the final projection


def _round_up(x, m):
    return ((x + m - 1) // m) * m


# --------------------------------- kernel ------------------------------------
def _dnn_regressor_kernel(x_ref, w1_ref, b1_ref, w2_ref, b2_ref,
                          w3_ref, b3_ref, w4_ref, b4_ref, out_ref):
    # Layer 1: (TB, in) @ (in, l1)
    h = jnp.dot(x_ref[...], w1_ref[...], preferred_element_type=jnp.float32)
    h = jnp.maximum(h + b1_ref[...], 0.0)
    # Layer 2: (TB, l1) @ (l1, l2)
    h = jnp.dot(h.astype(w2_ref.dtype), w2_ref[...],
                preferred_element_type=jnp.float32)
    h = jnp.maximum(h + b2_ref[...], 0.0)
    # Layer 3: (TB, l2) @ (l2, l3)
    h = jnp.dot(h.astype(w3_ref.dtype), w3_ref[...],
                preferred_element_type=jnp.float32)
    h = jnp.maximum(h + b3_ref[...], 0.0)
    # Output layer: (TB, l3) @ (l3, 128)  -- lane-dense padded projection
    y = jnp.dot(h.astype(w4_ref.dtype), w4_ref[...],
                preferred_element_type=jnp.float32)
    y = y + b4_ref[...]
    out_ref[...] = y.astype(out_ref.dtype)


# -------------------------------- wrapper ------------------------------------
def dnn_regressor_forward(x, params, *, max_batch_tile=512,
                          compute_dtype=jnp.float32):
    """x: (B, ...) -> (B, 1) float32.  Flatten happens in the wrapper."""
    w1, b1, w2, b2, w3, b3, w4, b4 = params
    b = x.shape[0]

    # nn.Flatten: (B, ...) -> (B, in_features)
    x2 = x.reshape(b, -1).astype(compute_dtype)
    in_features = x2.shape[1]
    assert w1.shape[1] == in_features

    l1, l2, l3 = w1.shape[0], w2.shape[0], w3.shape[0]

    # ---- batch tiling: TB multiple of 8 sublanes, up to max_batch_tile ----
    tb = min(_round_up(max(b, 1), 8), _round_up(max_batch_tile, 8))
    padded_b = _round_up(b, tb)
    if padded_b != b:
        x2 = jnp.pad(x2, ((0, padded_b - b), (0, 0)))
    grid = (padded_b // tb,)

    # ---- parameter glue (plain JAX): pre-transpose, pad final layer to 128 lanes
    w1_t = jnp.transpose(w1).astype(compute_dtype)            # (in, l1)
    w2_t = jnp.transpose(w2).astype(compute_dtype)            # (l1, l2)
    w3_t = jnp.transpose(w3).astype(compute_dtype)            # (l2, l3)
    w4_t = jnp.zeros((l3, OUT_LANES), compute_dtype).at[:, :1].set(
        jnp.transpose(w4).astype(compute_dtype))               # (l3, 128)
    b1_r = b1.reshape(1, l1).astype(jnp.float32)
    b2_r = b2.reshape(1, l2).astype(jnp.float32)
    b3_r = b3.reshape(1, l3).astype(jnp.float32)
    b4_r = jnp.zeros((1, OUT_LANES), jnp.float32).at[:, :1].set(
        b4.reshape(1, 1).astype(jnp.float32))                  # (1, 128)

    weights = (w1_t, b1_r, w2_t, b2_r, w3_t, b3_r, w4_t, b4_r)

    def const_spec(a):
        # whole-array block, constant block index -> stays resident in VMEM
        return pl.BlockSpec(a.shape, lambda i, n=a.ndim: (0,) * n)

    in_specs = [pl.BlockSpec((tb, in_features), lambda i: (i, 0))]
    in_specs += [const_spec(a) for a in weights]

    out = pl.pallas_call(
        _dnn_regressor_kernel,
        out_shape=jax.ShapeDtypeStruct((padded_b, OUT_LANES), jnp.float32),
        grid=grid,
        in_specs=in_specs,
        out_specs=pl.BlockSpec((tb, OUT_LANES), lambda i: (i, 0)),
        compiler_params=pltpu.CompilerParams(
            dimension_semantics=("parallel",)),
    )(x2, *weights)

    # drop batch padding and the 127 zero lanes of the padded projection
    return out[:b, :1]


# ------------------------- pure-JAX reference (check) -------------------------
def _reference_forward(x, params):
    w1, b1, w2, b2, w3, b3, w4, b4 = params
    h = x.reshape(x.shape[0], -1).astype(jnp.float32)
    h = jnp.maximum(h @ w1.T + b1, 0.0)
    h = jnp.maximum(h @ w2.T + b2, 0.0)
    h = jnp.maximum(h @ w3.T + b3, 0.0)
    return h @ w4.T + b4


# ---------------------------------- main --------------------------------------
if __name__ == "__main__":
    key = jax.random.PRNGKey(0)
    kx, k1, k2, k3, k4, k5, k6, k7, k8 = jax.random.split(key, 9)

    # deterministic synthetic parameters (shapes follow the nn.Module __init__)
    w1 = 0.05 * jax.random.normal(k1, (L1, INPUT_SIZE), jnp.float32)
    b1 = 0.05 * jax.random.normal(k2, (L1,), jnp.float32)
    w2 = 0.05 * jax.random.normal(k3, (L2, L1), jnp.float32)
    b2 = 0.05 * jax.random.normal(k4, (L2,), jnp.float32)
    w3 = 0.05 * jax.random.normal(k5, (L3, L2), jnp.float32)
    b3 = 0.05 * jax.random.normal(k6, (L3,), jnp.float32)
    w4 = 0.05 * jax.random.normal(k7, (1, L3), jnp.float32)
    b4 = 0.05 * jax.random.normal(k8, (1,), jnp.float32)
    params = (w1, b1, w2, b2, w3, b3, w4, b4)

    # small input consistent with the module: (batch=2, 4, 4) -> flatten -> 16 features
    x = jax.random.normal(kx, (2, 4, 4), jnp.float32)

    y = jax.block_until_ready(dnn_regressor_forward(x, params))
    y_ref = jax.block_until_ready(_reference_forward(x, params))

    assert y.shape == (2, 1)
    assert jnp.allclose(y, y_ref, atol=1e-4, rtol=1e-4)
    print("KERNEL_OK")
</pallas_src>

<mosaic_0001>
module attributes {stable_mosaic.version = 11 : i64} {
  func.func @_dnn_regressor_kernel(%arg0: i32, %arg1: memref<8x16xf32, #tpu.memory_space<vmem>>, %arg2: memref<16x512xf32, #tpu.memory_space<vmem>>, %arg3: memref<1x512xf32, #tpu.memory_space<vmem>>, %arg4: memref<512x128xf32, #tpu.memory_space<vmem>>, %arg5: memref<1x128xf32, #tpu.memory_space<vmem>>, %arg6: memref<128x64xf32, #tpu.memory_space<vmem>>, %arg7: memref<1x64xf32, #tpu.memory_space<vmem>>, %arg8: memref<64x128xf32, #tpu.memory_space<vmem>>, %arg9: memref<1x128xf32, #tpu.memory_space<vmem>>, %arg10: memref<8x128xf32, #tpu.memory_space<vmem>>) attributes {dimension_semantics = [#tpu.dimension_semantics<parallel>], iteration_bounds = array<i64: 1>, scalar_prefetch = 0 : i64, scratch_operands = 0 : i64, tpu.core_type = #tpu.core_type<tc>, window_params = [{transform_indices = @transform_0, window_bounds = array<i64: 8, 16>}, {pipeline_mode = #tpu.pipeline_mode<synchronous>, transform_indices = @transform_1, window_bounds = array<i64: 16, 512>}, {pipeline_mode = #tpu.pipeline_mode<synchronous>, transform_indices = @transform_2, window_bounds = array<i64: 1, 512>}, {pipeline_mode = #tpu.pipeline_mode<synchronous>, transform_indices = @transform_3, window_bounds = array<i64: 512, 128>}, {pipeline_mode = #tpu.pipeline_mode<synchronous>, transform_indices = @transform_4, window_bounds = array<i64: 1, 128>}, {pipeline_mode = #tpu.pipeline_mode<synchronous>, transform_indices = @transform_5, window_bounds = array<i64: 128, 64>}, {pipeline_mode = #tpu.pipeline_mode<synchronous>, transform_indices = @transform_6, window_bounds = array<i64: 1, 64>}, {pipeline_mode = #tpu.pipeline_mode<synchronous>, transform_indices = @transform_7, window_bounds = array<i64: 64, 128>}, {pipeline_mode = #tpu.pipeline_mode<synchronous>, transform_indices = @transform_8, window_bounds = array<i64: 1, 128>}, {transform_indices = @transform_9, window_bounds = array<i64: 8, 128>}]} {
    %c0 = arith.constant 0 : index
    %c0_0 = arith.constant 0 : index
    %0 = vector.load %arg1[%c0, %c0_0] : memref<8x16xf32, #tpu.memory_space<vmem>>, vector<8x16xf32>
    %c0_1 = arith.constant 0 : index
    %c0_2 = arith.constant 0 : index
    %1 = vector.load %arg2[%c0_1, %c0_2] : memref<16x512xf32, #tpu.memory_space<vmem>>, vector<16x512xf32>
    %cst = arith.constant dense<0.000000e+00> : vector<8x512xf32>
    %2 = tpu.matmul %0, %1, %cst {dimension_numbers = #tpu.dot_dimension_numbers<[1], [0], [0], [1], [0, 0, 1, 1], [], []>} : vector<8x16xf32>, vector<16x512xf32>, vector<8x512xf32> -> vector<8x512xf32>
    %c0_3 = arith.constant 0 : index
    %c0_4 = arith.constant 0 : index
    %3 = vector.load %arg3[%c0_3, %c0_4] : memref<1x512xf32, #tpu.memory_space<vmem>>, vector<1x512xf32>
    %4 = vector.broadcast %3 : vector<1x512xf32> to vector<8x512xf32>
    %5 = arith.addf %2, %4 : vector<8x512xf32>
    %cst_5 = arith.constant 0.000000e+00 : f32
    %6 = vector.broadcast %cst_5 : f32 to vector<8x512xf32>
    %7 = arith.maximumf %5, %6 : vector<8x512xf32>
    %c0_6 = arith.constant 0 : index
    %c0_7 = arith.constant 0 : index
    %8 = vector.load %arg4[%c0_6, %c0_7] : memref<512x128xf32, #tpu.memory_space<vmem>>, vector<512x128xf32>
    %cst_8 = arith.constant dense<0.000000e+00> : vector<8x128xf32>
    %9 = tpu.matmul %7, %8, %cst_8 {dimension_numbers = #tpu.dot_dimension_numbers<[1], [0], [0], [1], [0, 0, 1, 1], [], []>} : vector<8x512xf32>, vector<512x128xf32>, vector<8x128xf32> -> vector<8x128xf32>
    %c0_9 = arith.constant 0 : index
    %c0_10 = arith.constant 0 : index
    %10 = vector.load %arg5[%c0_9, %c0_10] : memref<1x128xf32, #tpu.memory_space<vmem>>, vector<1x128xf32>
    %11 = vector.broadcast %10 : vector<1x128xf32> to vector<8x128xf32>
    %12 = arith.addf %9, %11 : vector<8x128xf32>
    %cst_11 = arith.constant 0.000000e+00 : f32
    %13 = vector.broadcast %cst_11 : f32 to vector<8x128xf32>
    %14 = arith.maximumf %12, %13 : vector<8x128xf32>
    %c0_12 = arith.constant 0 : index
    %c0_13 = arith.constant 0 : index
    %15 = vector.load %arg6[%c0_12, %c0_13] : memref<128x64xf32, #tpu.memory_space<vmem>>, vector<128x64xf32>
    %cst_14 = arith.constant dense<0.000000e+00> : vector<8x64xf32>
    %16 = tpu.matmul %14, %15, %cst_14 {dimension_numbers = #tpu.dot_dimension_numbers<[1], [0], [0], [1], [0, 0, 1, 1], [], []>} : vector<8x128xf32>, vector<128x64xf32>, vector<8x64xf32> -> vector<8x64xf32>
    %c0_15 = arith.constant 0 : index
    %c0_16 = arith.constant 0 : index
    %17 = vector.load %arg7[%c0_15, %c0_16] : memref<1x64xf32, #tpu.memory_space<vmem>>, vector<1x64xf32>
    %18 = vector.broadcast %17 : vector<1x64xf32> to vector<8x64xf32>
    %19 = arith.addf %16, %18 : vector<8x64xf32>
    %cst_17 = arith.constant 0.000000e+00 : f32
    %20 = vector.broadcast %cst_17 : f32 to vector<8x64xf32>
    %21 = arith.maximumf %19, %20 : vector<8x64xf32>
    %c0_18 = arith.constant 0 : index
    %c0_19 = arith.constant 0 : index
    %22 = vector.load %arg8[%c0_18, %c0_19] : memref<64x128xf32, #tpu.memory_space<vmem>>, vector<64x128xf32>
    %cst_20 = arith.constant dense<0.000000e+00> : vector<8x128xf32>
    %23 = tpu.matmul %21, %22, %cst_20 {dimension_numbers = #tpu.dot_dimension_numbers<[1], [0], [0], [1], [0, 0, 1, 1], [], []>} : vector<8x64xf32>, vector<64x128xf32>, vector<8x128xf32> -> vector<8x128xf32>
    %c0_21 = arith.constant 0 : index
    %c0_22 = arith.constant 0 : index
    %24 = vector.load %arg9[%c0_21, %c0_22] : memref<1x128xf32, #tpu.memory_space<vmem>>, vector<1x128xf32>
    %25 = vector.broadcast %24 : vector<1x128xf32> to vector<8x128xf32>
    %26 = arith.addf %23, %25 : vector<8x128xf32>
    %c0_23 = arith.constant 0 : index
    %c0_24 = arith.constant 0 : index
    %27 = vector.load %arg10[%c0_23, %c0_24] : memref<8x128xf32, #tpu.memory_space<vmem>>, vector<8x128xf32>
    tpu.vector_store %arg10[%c0_23, %c0_24], %26 {strides = array<i32>} : memref<8x128xf32, #tpu.memory_space<vmem>>, vector<8x128xf32>,
    return
  }
  func.func @transform_0(%arg0: i32) -> (i32, i32) {
    %c0_i32 = arith.constant 0 : i32
    %c0_i32_0 = arith.constant 0 : i32
    return %arg0, %c0_i32 : i32, i32
  }
  func.func @transform_1(%arg0: i32) -> (i32, i32) {
    %c0_i32 = arith.constant 0 : i32
    %c0_i32_0 = arith.constant 0 : i32
    %c0_i32_1 = arith.constant 0 : i32
    return %c0_i32, %c0_i32_0 : i32, i32
  }
  func.func @transform_2(%arg0: i32) -> (i32, i32) {
    %c0_i32 = arith.constant 0 : i32
    %c0_i32_0 = arith.constant 0 : i32
    %c0_i32_1 = arith.constant 0 : i32
    return %c0_i32, %c0_i32_0 : i32, i32
  }
  func.func @transform_3(%arg0: i32) -> (i32, i32) {
    %c0_i32 = arith.constant 0 : i32
    %c0_i32_0 = arith.constant 0 : i32
    %c0_i32_1 = arith.constant 0 : i32
    return %c0_i32, %c0_i32_0 : i32, i32
  }
  func.func @transform_4(%arg0: i32) -> (i32, i32) {
    %c0_i32 = arith.constant 0 : i32
    %c0_i32_0 = arith.constant 0 : i32
    %c0_i32_1 = arith.constant 0 : i32
    return %c0_i32, %c0_i32_0 : i32, i32
  }
  func.func @transform_5(%arg0: i32) -> (i32, i32) {
    %c0_i32 = arith.constant 0 : i32
    %c0_i32_0 = arith.constant 0 : i32
    %c0_i32_1 = arith.constant 0 : i32
    return %c0_i32, %c0_i32_0 : i32, i32
  }
  func.func @transform_6(%arg0: i32) -> (i32, i32) {
    %c0_i32 = arith.constant 0 : i32
    %c0_i32_0 = arith.constant 0 : i32
    %c0_i32_1 = arith.constant 0 : i32
    return %c0_i32, %c0_i32_0 : i32, i32
  }
  func.func @transform_7(%arg0: i32) -> (i32, i32) {
    %c0_i32 = arith.constant 0 : i32
    %c0_i32_0 = arith.constant 0 : i32
    %c0_i32_1 = arith.constant 0 : i32
    return %c0_i32, %c0_i32_0 : i32, i32
  }
  func.func @transform_8(%arg0: i32) -> (i32, i32) {
    %c0_i32 = arith.constant 0 : i32
    %c0_i32_0 = arith.constant 0 : i32
    %c0_i32_1 = arith.constant 0 : i32
    return %c0_i32, %c0_i32_0 : i32, i32
  }
  func.func @transform_9(%arg0: i32) -> (i32, i32) {
    %c0_i32 = arith.constant 0 : i32
    %c0_i32_0 = arith.constant 0 : i32
    return %arg0, %c0_i32 : i32, i32
  }
}

</mosaic_0001>

<llo_original>
// kernel: tpu_custom_call.1
$region0: #{tpu_custom_call.1}
  #allocation0 [shape = 'u32[]', space=smem, size = 0x4, offset = 0x4, fixed_abs, tag = 'smem constant byte address 0x4 - core index']
  #allocation1 [shape = 'u32[72,128]{1,0:T(1,128)}', space=vmem, size = 0x9000, scoped, tag = 'internal scratch']
  %s0 = inlined_call_operand.vmem [shape: f32[8,16], index: 0, kind: input, shape index: {}]
  %s1 = inlined_call_operand.vmem [shape: f32[16,512], index: 1, kind: input, shape index: {}]
  %s2 = inlined_call_operand.vmem [shape: f32[1,512], index: 2, kind: input, shape index: {}]
  %s3 = inlined_call_operand.hbm [shape: f32[512,128], index: 3, kind: input, shape index: {}]
  %s4 = inlined_call_operand.vmem [shape: f32[1,128], index: 4, kind: input, shape index: {}]
  %s5 = inlined_call_operand.vmem [shape: f32[128,64], index: 5, kind: input, shape index: {}]
  %s6 = inlined_call_operand.vmem [shape: f32[1,64], index: 6, kind: input, shape index: {}]
  %s7 = inlined_call_operand.vmem [shape: f32[64,128], index: 7, kind: input, shape index: {}]
  %s8 = inlined_call_operand.vmem [shape: f32[1,128], index: 8, kind: input, shape index: {}]
  %s9 = inlined_call_operand.hbm [shape: f32[8,128], index: 9, kind: output, shape index: {}]
  %s10 = sld [smem:[#allocation0]]
  $region50: #{tpu_custom_call.1} parent=0
    _
  %s12 = ssub.s32 1, %s10
  %s13 = scalar_select 0, %s12, %s10
  $region1: #{tpu_custom_call.1} parent=0
    #allocation2 [shape = 'u8[262144]{0}', space=vmem, size = 0x40000, scoped, tag = 'input window, operand 3, single buffered']
    #allocation3 [shape = 's32[1]{0}', space=sflag, size = 0x4, scoped, tag = 'scoped memory for tpu_custom_call.1']
    #allocation4 [shape = 's32[1]{0}', space=sflag, size = 0x4, scoped, tag = 'scoped memory for tpu_custom_call.1']
    #allocation5 [shape = 'u8[4096]{0}', space=vmem, size = 0x1000, scoped, tag = 'output window, operand 0, single buffered']
    %14 = vsyncpa [#allocation3], 0
    %15 = vsyncpa [#allocation4], 0
    // Predicated region
    $region2: #{tpu_custom_call.1} parent=1 // pred_check
      _
    $region3: #{tpu_custom_call.1} parent=1 // pred_check_branch
      %17 = sbr.rel (0) target = $region5
    $region4: #{tpu_custom_call.1} parent=1 // pred_region
      _
    $region5: #{tpu_custom_call.1} parent=1 // pred_fallthru
      _
    // Predicated region
    $region6: #{tpu_custom_call.1} parent=1 // pred_check
      _
    $region7: #{tpu_custom_call.1} parent=1 // pred_check_branch
      %19 = sbr.rel (0) target = $region9
    $region8: #{tpu_custom_call.1} parent=1 // pred_region
      _
    $region9: #{tpu_custom_call.1} parent=1 // pred_fallthru
      _
    // Predicated region
    $region10: #{tpu_custom_call.1} parent=1 // pred_check
      _
    $region11: #{tpu_custom_call.1} parent=1 // pred_check_branch
      %21 = sbr.rel (0) target = $region13
    $region12: #{tpu_custom_call.1} parent=1 // pred_region
      _
    $region13: #{tpu_custom_call.1} parent=1 // pred_fallthru
      _
    // Predicated region
    $region14: #{tpu_custom_call.1} parent=1 // pred_check
      _
    $region15: #{tpu_custom_call.1} parent=1 // pred_check_branch
      %23 = sbr.rel (0) target = $region17
    $region16: #{tpu_custom_call.1} parent=1 // pred_region
      %25 = vsyncadd [#allocation3], 0
      %s26 = sshll.u32 %s3, 4
      %s27 = int_to_ptr.hbm [resolvable:$true] %s26
      %s28 = sshll.u32 [#allocation2], 4
      %s29 = int_to_ptr.vmem [resolvable:$true] %s28
      %34 = dma.hbm_to_vmem [thread:$0]  %s27, 8192, %s29, [#allocation3], 128, 128, 8
    $region17: #{tpu_custom_call.1} parent=1 // pred_fallthru
      _
    // Predicated region
    $region18: #{tpu_custom_call.1} parent=1 // pred_check
      _
    $region19: #{tpu_custom_call.1} parent=1 // pred_check_branch
      %36 = sbr.rel (0) target = $region21
    $region20: #{tpu_custom_call.1} parent=1 // pred_region
      _
    $region21: #{tpu_custom_call.1} parent=1 // pred_fallthru
      _
    // Predicated region
    $region22: #{tpu_custom_call.1} parent=1 // pred_check
      _
    $region23: #{tpu_custom_call.1} parent=1 // pred_check_branch
      %38 = sbr.rel (0) target = $region25
    $region24: #{tpu_custom_call.1} parent=1 // pred_region
      _
    $region25: #{tpu_custom_call.1} parent=1 // pred_fallthru
      _
    // Predicated region
    $region26: #{tpu_custom_call.1} parent=1 // pred_check
      _
    $region27: #{tpu_custom_call.1} parent=1 // pred_check_branch
      %40 = sbr.rel (0) target = $region29
    $region28: #{tpu_custom_call.1} parent=1 // pred_region
      _
    $region29: #{tpu_custom_call.1} parent=1 // pred_fallthru
      _
    // Predicated region
    $region30: #{tpu_custom_call.1} parent=1 // pred_check
      _
    $region31: #{tpu_custom_call.1} parent=1 // pred_check_branch
      %42 = sbr.rel (0) target = $region33
    $region32: #{tpu_custom_call.1} parent=1 // pred_region
      _
    $region33: #{tpu_custom_call.1} parent=1 // pred_fallthru
      _
    // Predicated region
    $region34: #{tpu_custom_call.1} parent=1 // pred_check
      _
    $region35: #{tpu_custom_call.1} parent=1 // pred_check_branch
      %44 = sbr.rel (0) target = $region37
    $region36: #{tpu_custom_call.1} parent=1 // pred_region
      _
    $region37: #{tpu_custom_call.1} parent=1 // pred_fallthru
      _
    // Predicated region
    $region38: #{tpu_custom_call.1} parent=1 // pred_check
      _
    $region39: #{tpu_custom_call.1} parent=1 // pred_check_branch
      %46 = sbr.rel (0) target = $region41
    $region40: #{tpu_custom_call.1} parent=1 // pred_region
      %48 = dma.done [#allocation3], 8192
    $region41: #{tpu_custom_call.1} parent=1 // pred_fallthru
      _
    %v49 = vld [vmem:[%s0] sm:$0xff]
    %v50 = vld [vmem:[%s1] sm:$0xff]
    %v51 = vld [vmem:[%s1 + $0x8] sm:$0xff]
    %v52 = vld [vmem:[%s1 + $0x10] sm:$0xff]
    %v53 = vld [vmem:[%s1 + $0x18] sm:$0xff]
    %v54 = vld [vmem:[%s1 + $0x20] sm:$0xff]
    %v55 = vld [vmem:[%s1 + $0x28] sm:$0xff]
    %v56 = vld [vmem:[%s1 + $0x30] sm:$0xff]
    %v57 = vld [vmem:[%s1 + $0x38] sm:$0xff]
    %v58 = vld [vmem:[%s2] sm:$0xf]
    %v60 = vperm.slane %v58, 0
    %v61 = vperm.slane %v58, 1
    %v62 = vperm.slane %v58, 2
    %v63 = vperm.slane %v58, 3
    %vm68 = vcmask 130048
    %v70 = vsel %vm68, %v49, 0
    %72 = vmatpush.msra.mxu0 0.0
    %73 = vmatpush.msra.mxu0 0.0
    %74 = vmatpush.msra.mxu0 0.0
    %75 = vmatpush.msra.mxu0 0.0
    %76 = vmatpush.msra.mxu0 0.0
    %77 = vmatpush.msra.mxu0 0.0
    %78 = vmatpush.msra.mxu0 0.0
    %79 = vmatpush.msra.mxu0 0.0
    %80 = vmatpush.msra.mxu0 0.0
    %81 = vmatpush.msra.mxu0 0.0
    %82 = vmatpush.msra.mxu0 0.0
    %83 = vmatpush.msra.mxu0 0.0
    %84 = vmatpush.msra.mxu0 0.0
    %85 = vmatpush.msra.mxu0 0.0
    %86 = vmatpush.msra.mxu0 %v54
    %87 = vmatpush.msra.mxu0 %v50
    %88 = vmatmul.f32.gmra.mxu0 %v70
    %v89 = vpop.f32.mrf.mxu0
    %v90 = vadd.f32 %v60, %v89
    %91 = vdwg.mxu0
    %92 = vmatpush.msra.mxu0 0.0
    %93 = vmatpush.msra.mxu0 0.0
    %94 = vmatpush.msra.mxu0 0.0
    %95 = vmatpush.msra.mxu0 0.0
    %96 = vmatpush.msra.mxu0 0.0
    %97 = vmatpush.msra.mxu0 0.0
    %98 = vmatpush.msra.mxu0 0.0
    %99 = vmatpush.msra.mxu0 0.0
    %100 = vmatpush.msra.mxu0 0.0
    %101 = vmatpush.msra.mxu0 0.0
    %102 = vmatpush.msra.mxu0 0.0
    %103 = vmatpush.msra.mxu0 0.0
    %104 = vmatpush.msra.mxu0 0.0
    %105 = vmatpush.msra.mxu0 0.0
    %106 = vmatpush.msra.mxu0 %v55
    %107 = vmatpush.msra.mxu0 %v51
    %108 = vmatmul.f32.gmra.mxu0 %v70
    %v109 = vpop.f32.mrf.mxu0
    %v110 = vadd.f32 %v61, %v109
    %111 = vdwg.mxu0
    %112 = vmatpush.msra.mxu0 0.0
    %113 = vmatpush.msra.mxu0 0.0
    %114 = vmatpush.msra.mxu0 0.0
    %115 = vmatpush.msra.mxu0 0.0
    %116 = vmatpush.msra.mxu0 0.0
    %117 = vmatpush.msra.mxu0 0.0
    %118 = vmatpush.msra.mxu0 0.0
    %119 = vmatpush.msra.mxu0 0.0
    %120 = vmatpush.msra.mxu0 0.0
    %121 = vmatpush.msra.mxu0 0.0
    %122 = vmatpush.msra.mxu0 0.0
    %123 = vmatpush.msra.mxu0 0.0
    %124 = vmatpush.msra.mxu0 0.0
    %125 = vmatpush.msra.mxu0 0.0
    %126 = vmatpush.msra.mxu0 %v56
    %127 = vmatpush.msra.mxu0 %v52
    %128 = vmatmul.f32.gmra.mxu0 %v70
    %v129 = vpop.f32.mrf.mxu0
    %v130 = vadd.f32 %v62, %v129
    %131 = vdwg.mxu0
    %132 = vmatpush.msra.mxu0 0.0
    %133 = vmatpush.msra.mxu0 0.0
    %134 = vmatpush.msra.mxu0 0.0
    %135 = vmatpush.msra.mxu0 0.0
    %136 = vmatpush.msra.mxu0 0.0
    %137 = vmatpush.msra.mxu0 0.0
    %138 = vmatpush.msra.mxu0 0.0
    %139 = vmatpush.msra.mxu0 0.0
    %140 = vmatpush.msra.mxu0 0.0
    %141 = vmatpush.msra.mxu0 0.0
    %142 = vmatpush.msra.mxu0 0.0
    %143 = vmatpush.msra.mxu0 0.0
    %144 = vmatpush.msra.mxu0 0.0
    %145 = vmatpush.msra.mxu0 0.0
    %146 = vmatpush.msra.mxu0 %v57
    %147 = vmatpush.msra.mxu0 %v53
    %148 = vmatmul.f32.gmra.mxu0 %v70
    %v149 = vpop.f32.mrf.mxu0
    %v150 = vadd.f32 %v63, %v149
    %151 = vdwg.mxu0
    %v152 = vmax.f32 %v90, 0.0
    %v153 = vmax.f32 %v110, 0.0
    %v154 = vmax.f32 %v130, 0.0
    %v155 = vmax.f32 %v150, 0.0
    %v156 = vld [vmem:[#allocation2] sm:$0xff]
    %v157 = vld [vmem:[#allocation2 + $0x8] sm:$0xff]
    %v158 = vld [vmem:[#allocation2 + $0x10] sm:$0xff]
    %v159 = vld [vmem:[#allocation2 + $0x18] sm:$0xff]
    %v160 = vld [vmem:[#allocation2 + $0x20] sm:$0xff]
    %v161 = vld [vmem:[#allocation2 + $0x28] sm:$0xff]
    %v162 = vld [vmem:[#allocation2 + $0x30] sm:$0xff]
    %v163 = vld [vmem:[#allocation2 + $0x38] sm:$0xff]
    %v164 = vld [vmem:[#allocation2 + $0x40] sm:$0xff]
    %v165 = vld [vmem:[#allocation2 + $0x48] sm:$0xff]
    %v166 = vld [vmem:[#allocation2 + $0x50] sm:$0xff]
    %v167 = vld [vmem:[#allocation2 + $0x58] sm:$0xff]
    %v168 = vld [vmem:[#allocation2 + $0x60] sm:$0xff]
    %v169 = vld [vmem:[#allocation2 + $0x68] sm:$0xff]
    %v170 = vld [vmem:[#allocation2 + $0x70] sm:$0xff]
    %v171 = vld [vmem:[#allocation2 + $0x78] sm:$0xff]
    %v172 = vld [vmem:[#allocation2 + $0x80] sm:$0xff]
    %v173 = vld [vmem:[#allocation2 + $0x88] sm:$0xff]
    %v174 = vld [vmem:[#allocation2 + $0x90] sm:$0xff]
    %v175 = vld [vmem:[#allocation2 + $0x98] sm:$0xff]
    %v176 = vld [vmem:[#allocation2 + $0xa0] sm:$0xff]
    %v177 = vld [vmem:[#allocation2 + $0xa8] sm:$0xff]
    %v178 = vld [vmem:[#allocation2 + $0xb0] sm:$0xff]
    %v179 = vld [vmem:[#allocation2 + $0xb8] sm:$0xff]
    %v180 = vld [vmem:[#allocation2 + $0xc0] sm:$0xff]
    %v181 = vld [vmem:[#allocation2 + $0xc8] sm:$0xff]
    %v182 = vld [vmem:[#allocation2 + $0xd0] sm:$0xff]
    %v183 = vld [vmem:[#allocation2 + $0xd8] sm:$0xff]
    %v184 = vld [vmem:[#allocation2 + $0xe0] sm:$0xff]
    %v185 = vld [vmem:[#allocation2 + $0xe8] sm:$0xff]
    %v186 = vld [vmem:[#allocation2 + $0xf0] sm:$0xff]
    %v187 = vld [vmem:[#allocation2 + $0xf8] sm:$0xff]
    %v188 = vld [vmem:[#allocation2 + $0x100] sm:$0xff]
    %v189 = vld [vmem:[#allocation2 + $0x108] sm:$0xff]
    %v190 = vld [vmem:[#allocation2 + $0x110] sm:$0xff]
    %v191 = vld [vmem:[#allocation2 + $0x118] sm:$0xff]
    %v192 = vld [vmem:[#allocation2 + $0x120] sm:$0xff]
    %v193 = vld [vmem:[#allocation2 + $0x128] sm:$0xff]
    %v194 = vld [vmem:[#allocation2 + $0x130] sm:$0xff]
    %v195 = vld [vmem:[#allocation2 + $0x138] sm:$0xff]
    %v196 = vld [vmem:[#allocation2 + $0x140] sm:$0xff]
    %v197 = vld [vmem:[#allocation2 + $0x148] sm:$0xff]
    %v198 = vld [vmem:[#allocation2 + $0x150] sm:$0xff]
    %v199 = vld [vmem:[#allocation2 + $0x158] sm:$0xff]
    %v200 = vld [vmem:[#allocation2 + $0x160] sm:$0xff]
    %v201 = vld [vmem:[#allocation2 + $0x168] sm:$0xff]
    %v202 = vld [vmem:[#allocation2 + $0x170] sm:$0xff]
    %v203 = vld [vmem:[#allocation2 + $0x178] sm:$0xff]
    %v204 = vld [vmem:[#allocation2 + $0x180] sm:$0xff]
    %v205 = vld [vmem:[#allocation2 + $0x188] sm:$0xff]
    %v206 = vld [vmem:[#allocation2 + $0x190] sm:$0xff]
    %v207 = vld [vmem:[#allocation2 + $0x198] sm:$0xff]
    %v208 = vld [vmem:[#allocation2 + $0x1a0] sm:$0xff]
    %v209 = vld [vmem:[#allocation2 + $0x1a8] sm:$0xff]
    %v210 = vld [vmem:[#allocation2 + $0x1b0] sm:$0xff]
    %v211 = vld [vmem:[#allocation2 + $0x1b8] sm:$0xff]
    %v212 = vld [vmem:[#allocation2 + $0x1c0] sm:$0xff]
    %v213 = vld [vmem:[#allocation2 + $0x1c8] sm:$0xff]
    %v214 = vld [vmem:[#allocation2 + $0x1d0] sm:$0xff]
    %v215 = vld [vmem:[#allocation2 + $0x1d8] sm:$0xff]
    %v216 = vld [vmem:[#allocation2 + $0x1e0] sm:$0xff]
    %v217 = vld [vmem:[#allocation2 + $0x1e8] sm:$0xff]
    %v218 = vld [vmem:[#allocation2 + $0x1f0] sm:$0xff]
    %v219 = vld [vmem:[#allocation2 + $0x1f8] sm:$0xff]
    %v220 = vld [vmem:[%s4] sm:$0x1]
    %v222 = vperm.slane %v220, 0
    %224 = vmatpush.msra.mxu0 %v171
    %225 = vmatpush.msra.mxu0 %v170
    %226 = vmatpush.msra.mxu0 %v169
    %227 = vmatpush.msra.mxu0 %v168
    %228 = vmatpush.msra.mxu0 %v167
    %229 = vmatpush.msra.mxu0 %v166
    %230 = vmatpush.msra.mxu0 %v165
    %231 = vmatpush.msra.mxu0 %v164
    %232 = vmatpush.msra.mxu0 %v163
    %233 = vmatpush.msra.mxu0 %v162
    %234 = vmatpush.msra.mxu0 %v161
    %235 = vmatpush.msra.mxu0 %v160
    %236 = vmatpush.msra.mxu0 %v159
    %237 = vmatpush.msra.mxu0 %v158
    %238 = vmatpush.msra.mxu0 %v157
    %239 = vmatpush.msra.mxu0 %v156
    %240 = vmatmul.f32.gmra.mxu0 %v152
    %v241 = vpop.f32.mrf.mxu0
    %v242 = vadd.f32 %v222, %v241
    %243 = vdwg.mxu0
    %244 = vmatpush.msra.mxu0 %v187
    %245 = vmatpush.msra.mxu0 %v186
    %246 = vmatpush.msra.mxu0 %v185
    %247 = vmatpush.msra.mxu0 %v184
    %248 = vmatpush.msra.mxu0 %v183
    %249 = vmatpush.msra.mxu0 %v182
    %250 = vmatpush.msra.mxu0 %v181
    %251 = vmatpush.msra.mxu0 %v180
    %252 = vmatpush.msra.mxu0 %v179
    %253 = vmatpush.msra.mxu0 %v178
    %254 = vmatpush.msra.mxu0 %v177
    %255 = vmatpush.msra.mxu0 %v176
    %256 = vmatpush.msra.mxu0 %v175
    %257 = vmatpush.msra.mxu0 %v174
    %258 = vmatpush.msra.mxu0 %v173
    %259 = vmatpush.msra.mxu0 %v172
    %260 = vmatmul.f32.gmra.mxu0 %v153
    %v261 = vpop.f32.mrf.mxu0
    %v262 = vadd.f32 %v242, %v261
    %263 = vdwg.mxu0
    %264 = vmatpush.msra.mxu0 %v203
    %265 = vmatpush.msra.mxu0 %v202
    %266 = vmatpush.msra.mxu0 %v201
    %267 = vmatpush.msra.mxu0 %v200
    %268 = vmatpush.msra.mxu0 %v199
    %269 = vmatpush.msra.mxu0 %v198
    %270 = vmatpush.msra.mxu0 %v197
    %271 = vmatpush.msra.mxu0 %v196
    %272 = vmatpush.msra.mxu0 %v195
    %273 = vmatpush.msra.mxu0 %v194
    %274 = vmatpush.msra.mxu0 %v193
    %275 = vmatpush.msra.mxu0 %v192
    %276 = vmatpush.msra.mxu0 %v191
    %277 = vmatpush.msra.mxu0 %v190
    %278 = vmatpush.msra.mxu0 %v189
    %279 = vmatpush.msra.mxu0 %v188
    %280 = vmatmul.f32.gmra.mxu0 %v154
    %v281 = vpop.f32.mrf.mxu0
    %v282 = vadd.f32 %v262, %v281
    %283 = vdwg.mxu0
    %284 = vmatpush.msra.mxu0 %v219
    %285 = vmatpush.msra.mxu0 %v218
    %286 = vmatpush.msra.mxu0 %v217
    %287 = vmatpush.msra.mxu0 %v216
    %288 = vmatpush.msra.mxu0 %v215
    %289 = vmatpush.msra.mxu0 %v214
    %290 = vmatpush.msra.mxu0 %v213
    %291 = vmatpush.msra.mxu0 %v212
    %292 = vmatpush.msra.mxu0 %v211
    %293 = vmatpush.msra.mxu0 %v210
    %294 = vmatpush.msra.mxu0 %v209
    %295 = vmatpush.msra.mxu0 %v208
    %296 = vmatpush.msra.mxu0 %v207
    %297 = vmatpush.msra.mxu0 %v206
    %298 = vmatpush.msra.mxu0 %v205
    %299 = vmatpush.msra.mxu0 %v204
    %300 = vmatmul.f32.gmra.mxu0 %v155
    %v301 = vpop.f32.mrf.mxu0
    %v302 = vadd.f32 %v282, %v301
    %303 = vdwg.mxu0
    %v304 = vmax.f32 %v302, 0.0
    %v305 = vld [vmem:[%s5] sm:$0xff]
    %v306 = vld [vmem:[%s5 + $0x8] sm:$0xff]
    %v307 = vld [vmem:[%s5 + $0x10] sm:$0xff]
    %v308 = vld [vmem:[%s5 + $0x18] sm:$0xff]
    %v309 = vld [vmem:[%s5 + $0x20] sm:$0xff]
    %v310 = vld [vmem:[%s5 + $0x28] sm:$0xff]
    %v311 = vld [vmem:[%s5 + $0x30] sm:$0xff]
    %v312 = vld [vmem:[%s5 + $0x38] sm:$0xff]
    %v313 = vld [vmem:[%s5 + $0x40] sm:$0xff]
    %v314 = vld [vmem:[%s5 + $0x48] sm:$0xff]
    %v315 = vld [vmem:[%s5 + $0x50] sm:$0xff]
    %v316 = vld [vmem:[%s5 + $0x58] sm:$0xff]
    %v317 = vld [vmem:[%s5 + $0x60] sm:$0xff]
    %v318 = vld [vmem:[%s5 + $0x68] sm:$0xff]
    %v319 = vld [vmem:[%s5 + $0x70] sm:$0xff]
    %v320 = vld [vmem:[%s5 + $0x78] sm:$0xff]
    %v321 = vld [vmem:[%s6] sm:$0x1]
    %v323 = vperm.slane %v321, 0
    %325 = vmatpush.msra.mxu0 %v320
    %326 = vmatpush.msra.mxu0 %v319
    %327 = vmatpush.msra.mxu0 %v318
    %328 = vmatpush.msra.mxu0 %v317
    %329 = vmatpush.msra.mxu0 %v316
    %330 = vmatpush.msra.mxu0 %v315
    %331 = vmatpush.msra.mxu0 %v314
    %332 = vmatpush.msra.mxu0 %v313
    %333 = vmatpush.msra.mxu0 %v312
    %334 = vmatpush.msra.mxu0 %v311
    %335 = vmatpush.msra.mxu0 %v310
    %336 = vmatpush.msra.mxu0 %v309
    %337 = vmatpush.msra.mxu0 %v308
    %338 = vmatpush.msra.mxu0 %v307
    %339 = vmatpush.msra.mxu0 %v306
    %340 = vmatpush.msra.mxu0 %v305
    %341 = vmatmul.f32.gmra.mxu0 %v304
    %v342 = vpop.f32.mrf.mxu0
    %v343 = vadd.f32 %v323, %v342
    %344 = vdwg.mxu0
    %v345 = vmax.f32 %v343, 0.0
    %v346 = vld [vmem:[%s7] sm:$0xff]
    %v347 = vld [vmem:[%s7 + $0x8] sm:$0xff]
    %v348 = vld [vmem:[%s7 + $0x10] sm:$0xff]
    %v349 = vld [vmem:[%s7 + $0x18] sm:$0xff]
    %v350 = vld [vmem:[%s7 + $0x20] sm:$0xff]
    %v351 = vld [vmem:[%s7 + $0x28] sm:$0xff]
    %v352 = vld [vmem:[%s7 + $0x30] sm:$0xff]
    %v353 = vld [vmem:[%s7 + $0x38] sm:$0xff]
    %v354 = vld [vmem:[%s8] sm:$0x1]
    %v356 = vperm.slane %v354, 0
    %vm358 = vcmask 523264
    %v360 = vsel %vm358, %v345, 0
    %362 = vmatpush.msra.mxu0 0.0
    %363 = vmatpush.msra.mxu0 0.0
    %364 = vmatpush.msra.mxu0 0.0
    %365 = vmatpush.msra.mxu0 0.0
    %366 = vmatpush.msra.mxu0 0.0
    %367 = vmatpush.msra.mxu0 0.0
    %368 = vmatpush.msra.mxu0 0.0
    %369 = vmatpush.msra.mxu0 0.0
    %370 = vmatpush.msra.mxu0 %v353
    %371 = vmatpush.msra.mxu0 %v352
    %372 = vmatpush.msra.mxu0 %v351
    %373 = vmatpush.msra.mxu0 %v350
    %374 = vmatpush.msra.mxu0 %v349
    %375 = vmatpush.msra.mxu0 %v348
    %376 = vmatpush.msra.mxu0 %v347
    %377 = vmatpush.msra.mxu0 %v346
    %378 = vmatmul.f32.gmra.mxu0 %v360
    %v379 = vpop.f32.mrf.mxu0
    %v380 = vadd.f32 %v356, %v379
    %381 = vdwg.mxu0
    %382 = vst [vmem:[#allocation5] sm:$0xff] %v380
    // Predicated region
    $region42: #{tpu_custom_call.1} parent=1 // pred_check
      _
    $region43: #{tpu_custom_call.1} parent=1 // pred_check_branch
      %384 = sbr.rel (0) target = $region45
    $region44: #{tpu_custom_call.1} parent=1 // pred_region
      %386 = vsyncadd [#allocation4], 0
      %s388 = sshll.u32 [#allocation5], 4
      %s389 = int_to_ptr.vmem [resolvable:$true] %s388
      %s390 = sshll.u32 %s9, 4
      %s391 = int_to_ptr.hbm [resolvable:$true] %s390
      %393 = dma.vmem_to_hbm [thread:$0]  %s389, 128, %s391, [#allocation4]
    $region45: #{tpu_custom_call.1} parent=1 // pred_fallthru
      _
    // Predicated region
    $region46: #{tpu_custom_call.1} parent=1 // pred_check
      _
    $region47: #{tpu_custom_call.1} parent=1 // pred_check_branch
      %395 = sbr.rel (0) target = $region49
    $region48: #{tpu_custom_call.1} parent=1 // pred_region
      %397 = dma.done [#allocation4], 128
    $region49: #{tpu_custom_call.1} parent=1 // pred_fallthru
      _
    %398 = vsyncpa [#allocation3], 1
    %399 = vsyncpa [#allocation4], 1

</llo_original>
